<compile_context>
chip_gen: v5e
topology: v5e:2x2
jax: 0.10.0
libtpu: 0.0.40
codegen_flags: <defaults>
</compile_context>

<pallas_src>
import functools

import jax
import jax.numpy as jnp
from jax.experimental import pallas as pl
from jax.experimental.pallas import tpu as pltpu


def _rnd8(x):
    return ((x + 7) // 8) * 8


# ----------------------------------------------------------------------------
# Kernel: one grid step = one batch tile (lanes).  Weight slab is VMEM-resident.
# ----------------------------------------------------------------------------
def fused_twin_kernel(x_ref, w_ref, out_ref, *, in_dim_p, h1, h2, offs):
    # x_ref:   (in_dim_p, tb) bf16  -- [states; actions; zero-pad], feature-major.
    # w_ref:   (rows, 128)   bf16  -- packed transposed fused params.
    # out_ref: (2, tb)       f32   -- row 0 = q1, row 1 = q2 (lane-dense stores).
    x = x_ref[...]

    # Static slices into the packed parameter slab (8-row-aligned offsets).
    w1t = w_ref[offs["w1t"]:offs["w1t"] + h1, 0:in_dim_p]               # (h1, in_p)
    b1t = w_ref[offs["b1t"]:offs["b1t"] + h1, 0:1].astype(jnp.float32)  # (h1, 1)
    w2t = w_ref[offs["w2t"]:offs["w2t"] + h2, 0:h1]                     # (h2, h1)
    b2t = w_ref[offs["b2t"]:offs["b2t"] + h2, 0:1].astype(jnp.float32)  # (h2, 1)
    w3t = w_ref[offs["w3t"]:offs["w3t"] + 2, 0:h2]                      # (2, h2)
    b3t = w_ref[offs["b3t"]:offs["b3t"] + 2, 0:1].astype(jnp.float32)   # (2, 1)

    # Layer 1 (merged states+actions contraction), f32 accumulate, ReLU in f32.
    h = jnp.dot(w1t, x, preferred_element_type=jnp.float32)             # (h1, tb)
    h = jnp.maximum(h + b1t, 0.0).astype(jnp.bfloat16)
    # Layer 2 (block-diagonal across the two Q-nets).
    h = jnp.dot(w2t, h, preferred_element_type=jnp.float32)             # (h2, tb)
    h = jnp.maximum(h + b2t, 0.0).astype(jnp.bfloat16)
    # Head: (2, tb) lane-dense output — row 0 = q1, row 1 = q2.
    out_ref[...] = jnp.dot(w3t, h, preferred_element_type=jnp.float32) + b3t


# ----------------------------------------------------------------------------
# One-time (init path) twin-net fusion + transposed bf16 slab packing.
# ----------------------------------------------------------------------------
def fuse_and_pack_params(params1, params2):
    """Fuse two MLPs (in->h->h->1) into one (in->2h->2h->2) and pack the
    TRANSPOSED weights/biases into a single 8-row-aligned (rows, 128) bf16 slab."""
    w1a, b1a, w2a, b2a, w3a, b3a = params1
    w1b, b1b, w2b, b2b, w3b, b3b = params2
    hh = w1a.shape[1]
    z_hh = jnp.zeros((hh, hh), jnp.float32)
    z_h1 = jnp.zeros((hh, 1), jnp.float32)
    W1 = jnp.concatenate([w1a, w1b], axis=1)                               # (in, 2h)
    B1 = jnp.concatenate([b1a, b1b], axis=1)                               # (1, 2h)
    W2 = jnp.concatenate([jnp.concatenate([w2a, z_hh], axis=1),
                          jnp.concatenate([z_hh, w2b], axis=1)], axis=0)   # (2h, 2h)
    B2 = jnp.concatenate([b2a, b2b], axis=1)                               # (1, 2h)
    W3 = jnp.concatenate([jnp.concatenate([w3a, z_h1], axis=1),
                          jnp.concatenate([z_h1, w3b], axis=1)], axis=0)   # (2h, 2)
    B3 = jnp.concatenate([b3a, b3b], axis=1)                               # (1, 2)

    pieces = [("w1t", W1.T), ("b1t", B1.T), ("w2t", W2.T), ("b2t", B2.T),
              ("w3t", W3.T), ("b3t", B3.T)]
    LANES = 128
    offs, chunks, row = {}, [], 0
    for name, arr in pieces:
        offs[name] = row
        r = _rnd8(arr.shape[0])
        blk = jnp.zeros((r, LANES), jnp.float32)
        blk = blk.at[:arr.shape[0], :arr.shape[1]].set(arr.astype(jnp.float32))
        chunks.append(blk)
        row += r
    slab = jnp.concatenate(chunks, axis=0).astype(jnp.bfloat16)
    return slab, offs


# ----------------------------------------------------------------------------
# Forward wrapper.
# ----------------------------------------------------------------------------
def _choose_tb(B, tb_cap=8192):
    """Batch tile (lane dim).  Single step for small batches; otherwise aim for
    >= 4 grid steps (keeps both v7x TCs busy + pipelining), 128-lane aligned,
    capped at tb_cap.  Per-step VMEM footprint stays ~1 MiB even at the cap."""
    if B <= 256:
        return B
    tb = ((pl.cdiv(B, 4) + 127) // 128) * 128
    return max(128, min(tb_cap, tb))


def twin_q_forward(states, actions, slab, offs, n_states, n_actions, h1, h2):
    """states: (B, n_states) f32, actions: (B, n_actions) f32.
    Returns (q1, q2), each (B, 1) f32 — matches TwinQNet.forward."""
    B = states.shape[0]
    in_dim = n_states + n_actions
    in_dim_p = _rnd8(in_dim)

    # torch.cat([states, actions], 1), zero-pad features to a multiple of 8,
    # cast to bf16 and go feature-major: (in_dim_p, B).
    x = jnp.concatenate([states, actions], axis=1)
    if in_dim_p != in_dim:
        x = jnp.pad(x, ((0, 0), (0, in_dim_p - in_dim)))
    xt = x.astype(jnp.bfloat16).T

    tb = _choose_tb(B)
    grid = (pl.cdiv(B, tb),)

    kernel = functools.partial(fused_twin_kernel,
                               in_dim_p=in_dim_p, h1=h1, h2=h2, offs=offs)

    out = pl.pallas_call(
        kernel,
        out_shape=jax.ShapeDtypeStruct((2, B), jnp.float32),
        grid=grid,
        in_specs=[
            pl.BlockSpec((in_dim_p, tb), lambda i: (0, i)),
            # Weight slab: same block every step -> stays VMEM-resident.
            pl.BlockSpec(slab.shape, lambda i: (0, 0)),
        ],
        out_specs=pl.BlockSpec((2, tb), lambda i: (0, i)),
        compiler_params=pltpu.CompilerParams(
            dimension_semantics=("parallel",)),   # batch tiles shard across TCs
    )(xt, slab)

    # Row 0 = q1, row 1 = q2; reshape to the module's (B, 1) outputs.
    return out[0:1, :].T, out[1:2, :].T


# ----------------------------------------------------------------------------
# Init + reference (unfused, f32) for correctness checking.
# ----------------------------------------------------------------------------
def init_params(key, in_dim, layers):
    """Deterministic init for one MLP: dims = [in_dim] + layers + [1].
    Mirrors nn.Linear's uniform(-1/sqrt(fan_in), 1/sqrt(fan_in)) init."""
    dims = [in_dim] + list(layers) + [1]
    params = []
    for i in range(len(dims) - 1):
        key, kw, kb = jax.random.split(key, 3)
        bound = 1.0 / jnp.sqrt(jnp.float32(dims[i]))
        w = jax.random.uniform(kw, (dims[i], dims[i + 1]), jnp.float32, -bound, bound)
        b = jax.random.uniform(kb, (1, dims[i + 1]), jnp.float32, -bound, bound)
        params += [w, b]
    return params, key


def reference_forward(states, actions, params1, params2):
    x = jnp.concatenate([states, actions], axis=1)

    def mlp(p):
        w1, b1, w2, b2, w3, b3 = p
        h = jnp.maximum(x @ w1 + b1, 0.0)
        h = jnp.maximum(h @ w2 + b2, 0.0)
        return h @ w3 + b3

    return mlp(params1), mlp(params2)


if __name__ == "__main__":
    n_states = 16
    n_actions = 4
    mlp_layers = [32, 32]
    h1 = 2 * mlp_layers[0]   # fused hidden width 64
    h2 = 2 * mlp_layers[1]   # fused hidden width 64
    in_dim = n_states + n_actions

    key = jax.random.PRNGKey(0)
    params1, key = init_params(key, in_dim, mlp_layers)   # q_net1
    params2, key = init_params(key, in_dim, mlp_layers)   # q_net2

    # One-time parameter fusion + packing (init path, not the hot path).
    slab, offs = fuse_and_pack_params(params1, params2)

    # Small single-step case (B=2) and a multi-step tiled case (B=384 -> grid=3).
    for B in (2, 384):
        key, ks, ka = jax.random.split(key, 3)
        states = jax.random.normal(ks, (B, n_states), jnp.float32)
        actions = jax.random.normal(ka, (B, n_actions), jnp.float32)

        q1, q2 = twin_q_forward(states, actions, slab, offs,
                                n_states, n_actions, h1, h2)
        q1 = jax.block_until_ready(q1)
        q2 = jax.block_until_ready(q2)

        r1, r2 = reference_forward(states, actions, params1, params2)
        assert q1.shape == (B, 1) and q2.shape == (B, 1)
        # bf16 weights/activations (f32 accumulation) vs pure-f32 reference.
        assert jnp.allclose(q1, r1, atol=2e-2, rtol=2e-2), f"q1 mismatch (B={B})"
        assert jnp.allclose(q2, r2, atol=2e-2, rtol=2e-2), f"q2 mismatch (B={B})"

    print("KERNEL_OK")
</pallas_src>

<mosaic_0001>
module attributes {stable_mosaic.version = 11 : i64} {
  func.func @fused_twin_kernel(%arg0: i32, %arg1: memref<24x2xbf16, #tpu.memory_space<vmem>>, %arg2: memref<272x128xbf16, #tpu.memory_space<vmem>>, %arg3: memref<2x2xf32, #tpu.memory_space<vmem>>) attributes {dimension_semantics = [#tpu.dimension_semantics<parallel>], iteration_bounds = array<i64: 1>, scalar_prefetch = 0 : i64, scratch_operands = 0 : i64, tpu.core_type = #tpu.core_type<tc>, window_params = [{transform_indices = @transform_0, window_bounds = array<i64: 24, 2>}, {pipeline_mode = #tpu.pipeline_mode<synchronous>, transform_indices = @transform_1, window_bounds = array<i64: 272, 128>}, {transform_indices = @transform_2, window_bounds = array<i64: 2, 2>}]} {
    %c0 = arith.constant 0 : index
    %c0_0 = arith.constant 0 : index
    %0 = vector.load %arg1[%c0, %c0_0] : memref<24x2xbf16, #tpu.memory_space<vmem>>, vector<24x2xbf16>
    %c0_1 = arith.constant 0 : index
    %c0_2 = arith.constant 0 : index
    %1 = vector.load %arg2[%c0_1, %c0_2] : memref<272x128xbf16, #tpu.memory_space<vmem>>, vector<64x24xbf16>
    %c64 = arith.constant 64 : index
    %c0_3 = arith.constant 0 : index
    %2 = vector.load %arg2[%c64, %c0_3] : memref<272x128xbf16, #tpu.memory_space<vmem>>, vector<64x1xbf16>
    %3 = arith.extf %2 : vector<64x1xbf16> to vector<64x1xf32>
    %c128 = arith.constant 128 : index
    %c0_4 = arith.constant 0 : index
    %4 = vector.load %arg2[%c128, %c0_4] : memref<272x128xbf16, #tpu.memory_space<vmem>>, vector<64x64xbf16>
    %c192 = arith.constant 192 : index
    %c0_5 = arith.constant 0 : index
    %5 = vector.load %arg2[%c192, %c0_5] : memref<272x128xbf16, #tpu.memory_space<vmem>>, vector<64x1xbf16>
    %6 = arith.extf %5 : vector<64x1xbf16> to vector<64x1xf32>
    %c256 = arith.constant 256 : index
    %c0_6 = arith.constant 0 : index
    %7 = vector.load %arg2[%c256, %c0_6] : memref<272x128xbf16, #tpu.memory_space<vmem>>, vector<2x64xbf16>
    %c264 = arith.constant 264 : index
    %c0_7 = arith.constant 0 : index
    %8 = vector.load %arg2[%c264, %c0_7] : memref<272x128xbf16, #tpu.memory_space<vmem>>, vector<2x1xbf16>
    %9 = arith.extf %8 : vector<2x1xbf16> to vector<2x1xf32>
    %cst = arith.constant dense<0.000000e+00> : vector<64x2xf32>
    %10 = tpu.matmul %1, %0, %cst {dimension_numbers = #tpu.dot_dimension_numbers<[1], [0], [0], [1], [0, 0, 1, 1], [], []>} : vector<64x24xbf16>, vector<24x2xbf16>, vector<64x2xf32> -> vector<64x2xf32>
    %11 = vector.broadcast %3 : vector<64x1xf32> to vector<64x2xf32>
    %12 = arith.addf %10, %11 : vector<64x2xf32>
    %cst_8 = arith.constant 0.000000e+00 : f32
    %13 = vector.broadcast %cst_8 : f32 to vector<64x2xf32>
    %14 = arith.maximumf %12, %13 : vector<64x2xf32>
    %15 = arith.truncf %14 : vector<64x2xf32> to vector<64x2xbf16>
    %cst_9 = arith.constant dense<0.000000e+00> : vector<64x2xf32>
    %16 = tpu.matmul %4, %15, %cst_9 {dimension_numbers = #tpu.dot_dimension_numbers<[1], [0], [0], [1], [0, 0, 1, 1], [], []>} : vector<64x64xbf16>, vector<64x2xbf16>, vector<64x2xf32> -> vector<64x2xf32>
    %17 = vector.broadcast %6 : vector<64x1xf32> to vector<64x2xf32>
    %18 = arith.addf %16, %17 : vector<64x2xf32>
    %cst_10 = arith.constant 0.000000e+00 : f32
    %19 = vector.broadcast %cst_10 : f32 to vector<64x2xf32>
    %20 = arith.maximumf %18, %19 : vector<64x2xf32>
    %21 = arith.truncf %20 : vector<64x2xf32> to vector<64x2xbf16>
    %cst_11 = arith.constant dense<0.000000e+00> : vector<2x2xf32>
    %22 = tpu.matmul %7, %21, %cst_11 {dimension_numbers = #tpu.dot_dimension_numbers<[1], [0], [0], [1], [0, 0, 1, 1], [], []>} : vector<2x64xbf16>, vector<64x2xbf16>, vector<2x2xf32> -> vector<2x2xf32>
    %23 = vector.broadcast %9 : vector<2x1xf32> to vector<2x2xf32>
    %24 = arith.addf %22, %23 : vector<2x2xf32>
    %c0_12 = arith.constant 0 : index
    %c0_13 = arith.constant 0 : index
    %25 = vector.load %arg3[%c0_12, %c0_13] : memref<2x2xf32, #tpu.memory_space<vmem>>, vector<2x2xf32>
    tpu.vector_store %arg3[%c0_12, %c0_13], %24 {strides = array<i32>} : memref<2x2xf32, #tpu.memory_space<vmem>>, vector<2x2xf32>,
    return
  }
  func.func @transform_0(%arg0: i32) -> (i32, i32) {
    %c0_i32 = arith.constant 0 : i32
    %c0_i32_0 = arith.constant 0 : i32
    return %c0_i32, %arg0 : i32, i32
  }
  func.func @transform_1(%arg0: i32) -> (i32, i32) {
    %c0_i32 = arith.constant 0 : i32
    %c0_i32_0 = arith.constant 0 : i32
    %c0_i32_1 = arith.constant 0 : i32
    return %c0_i32, %c0_i32_0 : i32, i32
  }
  func.func @transform_2(%arg0: i32) -> (i32, i32) {
    %c0_i32 = arith.constant 0 : i32
    %c0_i32_0 = arith.constant 0 : i32
    return %c0_i32, %arg0 : i32, i32
  }
}

</mosaic_0001>

<llo_original>
// kernel: tpu_custom_call.1
$region0: #{tpu_custom_call.1}
  #allocation0 [shape = 'u32[]', space=smem, size = 0x4, offset = 0x4, fixed_abs, tag = 'smem constant byte address 0x4 - core index']
  #allocation1 [shape = 'u32[72,128]{1,0:T(1,128)}', space=vmem, size = 0x9000, scoped, tag = 'internal scratch']
  %s0 = inlined_call_operand.vmem [shape: bf16[24,2], index: 0, kind: input, shape index: {}]
  %s1 = inlined_call_operand.hbm [shape: bf16[272,128], index: 1, kind: input, shape index: {}]
  %s2 = inlined_call_operand.hbm [shape: f32[2,2], index: 2, kind: output, shape index: {}]
  %s3 = sld [smem:[#allocation0]]
  $region22: #{tpu_custom_call.1} parent=0
    _
  %s5 = ssub.s32 1, %s3
  %s6 = scalar_select 0, %s5, %s3
  $region1: #{tpu_custom_call.1} parent=0
    #allocation2 [shape = 'u8[69632]{0}', space=vmem, size = 0x11000, scoped, tag = 'input window, operand 1, single buffered']
    #allocation3 [shape = 's32[1]{0}', space=sflag, size = 0x4, scoped, tag = 'scoped memory for tpu_custom_call.1']
    #allocation4 [shape = 's32[1]{0}', space=sflag, size = 0x4, scoped, tag = 'scoped memory for tpu_custom_call.1']
    #allocation5 [shape = 'u8[1024]{0}', space=vmem, size = 0x400, scoped, tag = 'output window, operand 0, single buffered']
    %7 = vsyncpa [#allocation3], 0
    %8 = vsyncpa [#allocation4], 0
    // Predicated region
    $region2: #{tpu_custom_call.1} parent=1 // pred_check
      _
    $region3: #{tpu_custom_call.1} parent=1 // pred_check_branch
      %10 = sbr.rel (0) target = $region5
    $region4: #{tpu_custom_call.1} parent=1 // pred_region
      _
    $region5: #{tpu_custom_call.1} parent=1 // pred_fallthru
      _
    // Predicated region
    $region6: #{tpu_custom_call.1} parent=1 // pred_check
      _
    $region7: #{tpu_custom_call.1} parent=1 // pred_check_branch
      %12 = sbr.rel (0) target = $region9
    $region8: #{tpu_custom_call.1} parent=1 // pred_region
      %14 = vsyncadd [#allocation3], 0
      %s15 = sshll.u32 %s1, 4
      %s16 = int_to_ptr.hbm [resolvable:$true] %s15
      %s17 = sshll.u32 [#allocation2], 4
      %s18 = int_to_ptr.vmem [resolvable:$true] %s17
      %23 = dma.hbm_to_vmem [thread:$0]  %s16, 2176, %s18, [#allocation3], 64, 64, 4
    $region9: #{tpu_custom_call.1} parent=1 // pred_fallthru
      _
    // Predicated region
    $region10: #{tpu_custom_call.1} parent=1 // pred_check
      _
    $region11: #{tpu_custom_call.1} parent=1 // pred_check_branch
      %25 = sbr.rel (0) target = $region13
    $region12: #{tpu_custom_call.1} parent=1 // pred_region
      %27 = dma.done [#allocation3], 2176
    $region13: #{tpu_custom_call.1} parent=1 // pred_fallthru
      _
    %v29 = vld [vmem:[%s0] sm:$0xf]
    %v30 = vld [vmem:[%s0 + $0x4] sm:$0xf]
    %v31 = vld [vmem:[%s0 + $0x8] sm:$0xf]
    %v32 = vld [vmem:[#allocation2] sm:$0xf]
    %v33 = vld [vmem:[#allocation2 + $0x4] sm:$0xf]
    %v34 = vld [vmem:[#allocation2 + $0x8] sm:$0xf]
    %v35 = vld [vmem:[#allocation2 + $0xc] sm:$0xf]
    %v36 = vld [vmem:[#allocation2 + $0x10] sm:$0xf]
    %v37 = vld [vmem:[#allocation2 + $0x14] sm:$0xf]
    %v38 = vld [vmem:[#allocation2 + $0x18] sm:$0xf]
    %v39 = vld [vmem:[#allocation2 + $0x1c] sm:$0xf]
    %v40 = vld [vmem:[#allocation2 + $0x20] sm:$0xf]
    %v41 = vld [vmem:[#allocation2 + $0x24] sm:$0xf]
    %v42 = vld [vmem:[#allocation2 + $0x28] sm:$0xf]
    %v43 = vld [vmem:[#allocation2 + $0x2c] sm:$0xf]
    %v44 = vld [vmem:[#allocation2 + $0x30] sm:$0xf]
    %v45 = vld [vmem:[#allocation2 + $0x34] sm:$0xf]
    %v46 = vld [vmem:[#allocation2 + $0x38] sm:$0xf]
    %v47 = vld [vmem:[#allocation2 + $0x3c] sm:$0xf]
    %v48 = vunpack.c.l.bf16 %v40
    %v49 = vunpack.c.l.bf16 %v41
    %v50 = vunpack.c.l.bf16 %v42
    %v51 = vunpack.c.l.bf16 %v43
    %v52 = vunpack.c.l.bf16 %v44
    %v53 = vunpack.c.l.bf16 %v45
    %v54 = vunpack.c.l.bf16 %v46
    %v55 = vunpack.c.l.bf16 %v47
    %v56 = vld [vmem:[#allocation2 + $0x40] sm:$0xf]
    %v57 = vld [vmem:[#allocation2 + $0x44] sm:$0xf]
    %v58 = vld [vmem:[#allocation2 + $0x48] sm:$0xf]
    %v59 = vld [vmem:[#allocation2 + $0x4c] sm:$0xf]
    %v60 = vld [vmem:[#allocation2 + $0x50] sm:$0xf]
    %v61 = vld [vmem:[#allocation2 + $0x54] sm:$0xf]
    %v62 = vld [vmem:[#allocation2 + $0x58] sm:$0xf]
    %v63 = vld [vmem:[#allocation2 + $0x5c] sm:$0xf]
    %v64 = vld [vmem:[#allocation2 + $0x60] sm:$0xf]
    %v65 = vld [vmem:[#allocation2 + $0x64] sm:$0xf]
    %v66 = vld [vmem:[#allocation2 + $0x68] sm:$0xf]
    %v67 = vld [vmem:[#allocation2 + $0x6c] sm:$0xf]
    %v68 = vld [vmem:[#allocation2 + $0x70] sm:$0xf]
    %v69 = vld [vmem:[#allocation2 + $0x74] sm:$0xf]
    %v70 = vld [vmem:[#allocation2 + $0x78] sm:$0xf]
    %v71 = vld [vmem:[#allocation2 + $0x7c] sm:$0xf]
    %v72 = vunpack.c.l.bf16 %v64
    %v73 = vunpack.c.l.bf16 %v65
    %v74 = vunpack.c.l.bf16 %v66
    %v75 = vunpack.c.l.bf16 %v67
    %v76 = vunpack.c.l.bf16 %v68
    %v77 = vunpack.c.l.bf16 %v69
    %v78 = vunpack.c.l.bf16 %v70
    %v79 = vunpack.c.l.bf16 %v71
    %v80 = vld [vmem:[#allocation2 + $0x80] sm:$0x1]
    %v81 = vld [vmem:[#allocation2 + $0x84] sm:$0x1]
    %v82 = vunpack.c.l.bf16 %v81
    %84 = vset.pattern.permute.xlu0 0
    %85 = vperm.xlu0 %84, %v48
    %v86 = vpop.permute.xlu0 %85
    %89 = vset.pattern.permute.xlu0 0
    %90 = vperm.xlu0 %89, %v49
    %v91 = vpop.permute.xlu0 %90
    %94 = vset.pattern.permute.xlu0 0
    %95 = vperm.xlu0 %94, %v50
    %v96 = vpop.permute.xlu0 %95
    %99 = vset.pattern.permute.xlu0 0
    %100 = vperm.xlu0 %99, %v51
    %v101 = vpop.permute.xlu0 %100
    %104 = vset.pattern.permute.xlu0 0
    %105 = vperm.xlu0 %104, %v52
    %v106 = vpop.permute.xlu0 %105
    %109 = vset.pattern.permute.xlu0 0
    %110 = vperm.xlu0 %109, %v53
    %v111 = vpop.permute.xlu0 %110
    %114 = vset.pattern.permute.xlu0 0
    %115 = vperm.xlu0 %114, %v54
    %v116 = vpop.permute.xlu0 %115
    %119 = vset.pattern.permute.xlu0 0
    %120 = vperm.xlu0 %119, %v55
    %v121 = vpop.permute.xlu0 %120
    %v131 = vunpack.c.l.b16 %v32
    %v132 = vunpack.c.l.b16 %v33
    %v133 = vunpack.c.l.b16 %v34
    %v134 = vunpack.c.l.b16 %v35
    %v135 = vunpack.c.l.b16 %v36
    %v136 = vunpack.c.l.b16 %v37
    %v137 = vunpack.c.l.b16 %v38
    %v138 = vunpack.c.l.b16 %v39
    %v139 = vpack.c.b16 %v132, %v131
    %v140 = vpack.c.b16 %v134, %v133
    %v141 = vpack.c.b16 %v136, %v135
    %v142 = vpack.c.b16 %v138, %v137
    %v146 = vunpack.c.l.b16 %v29
    %v147 = vunpack.c.l.b16 %v30
    %v148 = vunpack.c.l.b16 %v31
    %v149 = vpack.c.b16 %v147, %v146
    %v150 = vpack.c.b16 %v148, %v148
    %vm152 = vcmask 195584
    %v154 = vsel %vm152, %v139, 0
    %v157 = vsel %vm152, %v140, 0
    %v160 = vsel %vm152, %v141, 0
    %v163 = vsel %vm152, %v142, 0
    %vm165 = vcmask 1043456
    %v167 = vsel %vm165, %v150, 0
    %169 = vmatpush.bf16.msra.mxu0 0
    %170 = vmatpush.bf16.msra.mxu0 0
    %171 = vmatpush.bf16.msra.mxu0 0
    %172 = vmatpush.bf16.msra.mxu0 0
    %173 = vmatpush.bf16.msra.mxu0 0
    %174 = vmatpush.bf16.msra.mxu0 0
    %175 = vmatpush.bf16.msra.mxu0 %v167
    %176 = vmatpush.bf16.msra.mxu0 %v149
    %177 = vmatmul.bf16.gmra.mxu0 %v154
    %v178 = vpop.f32.mrf.mxu0
    %v179 = vadd.f32 %v86, %v178
    %v180 = vpop.f32.mrf.mxu0
    %v181 = vadd.f32 %v91, %v180
    %182 = vmatmul.bf16.gmra.mxu0 %v157
    %v183 = vpop.f32.mrf.mxu0
    %v184 = vadd.f32 %v96, %v183
    %v185 = vpop.f32.mrf.mxu0
    %v186 = vadd.f32 %v101, %v185
    %187 = vmatmul.bf16.gmra.mxu0 %v160
    %v188 = vpop.f32.mrf.mxu0
    %v189 = vadd.f32 %v106, %v188
    %v190 = vpop.f32.mrf.mxu0
    %v191 = vadd.f32 %v111, %v190
    %192 = vmatmul.bf16.gmra.mxu0 %v163
    %v193 = vpop.f32.mrf.mxu0
    %v194 = vadd.f32 %v116, %v193
    %v195 = vpop.f32.mrf.mxu0
    %v196 = vadd.f32 %v121, %v195
    %197 = vdwg.mxu0
    %v198 = vmax.f32 %v179, 0.0
    %v199 = vmax.f32 %v181, 0.0
    %v200 = vmax.f32 %v184, 0.0
    %v201 = vmax.f32 %v186, 0.0
    %v202 = vmax.f32 %v189, 0.0
    %v203 = vmax.f32 %v191, 0.0
    %v204 = vmax.f32 %v194, 0.0
    %v205 = vmax.f32 %v196, 0.0
    %v206 = vpack.c.bf16 %v199, %v198
    %v207 = vpack.c.bf16 %v201, %v200
    %v208 = vpack.c.bf16 %v203, %v202
    %v209 = vpack.c.bf16 %v205, %v204
    %211 = vset.pattern.permute.xlu0 0
    %212 = vperm.xlu0 %211, %v72
    %v213 = vpop.permute.xlu0 %212
    %216 = vset.pattern.permute.xlu0 0
    %217 = vperm.xlu0 %216, %v73
    %v218 = vpop.permute.xlu0 %217
    %221 = vset.pattern.permute.xlu0 0
    %222 = vperm.xlu0 %221, %v74
    %v223 = vpop.permute.xlu0 %222
    %226 = vset.pattern.permute.xlu0 0
    %227 = vperm.xlu0 %226, %v75
    %v228 = vpop.permute.xlu0 %227
    %231 = vset.pattern.permute.xlu0 0
    %232 = vperm.xlu0 %231, %v76
    %v233 = vpop.permute.xlu0 %232
    %236 = vset.pattern.permute.xlu0 0
    %237 = vperm.xlu0 %236, %v77
    %v238 = vpop.permute.xlu0 %237
    %241 = vset.pattern.permute.xlu0 0
    %242 = vperm.xlu0 %241, %v78
    %v243 = vpop.permute.xlu0 %242
    %246 = vset.pattern.permute.xlu0 0
    %247 = vperm.xlu0 %246, %v79
    %v248 = vpop.permute.xlu0 %247
    %v258 = vunpack.c.l.b16 %v56
    %v259 = vunpack.c.l.b16 %v57
    %v260 = vunpack.c.l.b16 %v58
    %v261 = vunpack.c.l.b16 %v59
    %v262 = vunpack.c.l.b16 %v60
    %v263 = vunpack.c.l.b16 %v61
    %v264 = vunpack.c.l.b16 %v62
    %v265 = vunpack.c.l.b16 %v63
    %v266 = vpack.c.b16 %v259, %v258
    %v267 = vpack.c.b16 %v261, %v260
    %v268 = vpack.c.b16 %v263, %v262
    %v269 = vpack.c.b16 %v265, %v264
    %vm270 = vcmask 523264
    %v272 = vsel %vm270, %v266, 0
    %v275 = vsel %vm270, %v267, 0
    %v278 = vsel %vm270, %v268, 0
    %v281 = vsel %vm270, %v269, 0
    %283 = vmatpush.bf16.msra.mxu0 0
    %284 = vmatpush.bf16.msra.mxu0 0
    %285 = vmatpush.bf16.msra.mxu0 0
    %286 = vmatpush.bf16.msra.mxu0 0
    %287 = vmatpush.bf16.msra.mxu0 %v209
    %288 = vmatpush.bf16.msra.mxu0 %v208
    %289 = vmatpush.bf16.msra.mxu0 %v207
    %290 = vmatpush.bf16.msra.mxu0 %v206
    %291 = vmatmul.bf16.gmra.mxu0 %v272
    %v292 = vpop.f32.mrf.mxu0
    %v293 = vadd.f32 %v213, %v292
    %v294 = vpop.f32.mrf.mxu0
    %v295 = vadd.f32 %v218, %v294
    %296 = vmatmul.bf16.gmra.mxu0 %v275
    %v297 = vpop.f32.mrf.mxu0
    %v298 = vadd.f32 %v223, %v297
    %v299 = vpop.f32.mrf.mxu0
    %v300 = vadd.f32 %v228, %v299
    %301 = vmatmul.bf16.gmra.mxu0 %v278
    %v302 = vpop.f32.mrf.mxu0
    %v303 = vadd.f32 %v233, %v302
    %v304 = vpop.f32.mrf.mxu0
    %v305 = vadd.f32 %v238, %v304
    %306 = vmatmul.bf16.gmra.mxu0 %v281
    %v307 = vpop.f32.mrf.mxu0
    %v308 = vadd.f32 %v243, %v307
    %v309 = vpop.f32.mrf.mxu0
    %v310 = vadd.f32 %v248, %v309
    %311 = vdwg.mxu0
    %v312 = vmax.f32 %v293, 0.0
    %v313 = vmax.f32 %v295, 0.0
    %v314 = vmax.f32 %v298, 0.0
    %v315 = vmax.f32 %v300, 0.0
    %v316 = vmax.f32 %v303, 0.0
    %v317 = vmax.f32 %v305, 0.0
    %v318 = vmax.f32 %v308, 0.0
    %v319 = vmax.f32 %v310, 0.0
    %v320 = vpack.c.bf16 %v313, %v312
    %v321 = vpack.c.bf16 %v315, %v314
    %v322 = vpack.c.bf16 %v317, %v316
    %v323 = vpack.c.bf16 %v319, %v318
    %325 = vset.pattern.permute.xlu0 0
    %326 = vperm.xlu0 %325, %v82
    %v327 = vpop.permute.xlu0 %326
    %v330 = vsel %vm270, %v80, 0
    %332 = vmatpush.bf16.msra.mxu0 0
    %333 = vmatpush.bf16.msra.mxu0 0
    %334 = vmatpush.bf16.msra.mxu0 0
    %335 = vmatpush.bf16.msra.mxu0 0
    %336 = vmatpush.bf16.msra.mxu0 %v323
    %337 = vmatpush.bf16.msra.mxu0 %v322
    %338 = vmatpush.bf16.msra.mxu0 %v321
    %339 = vmatpush.bf16.msra.mxu0 %v320
    %340 = vmatmul.bf16.gmra.mxu0 %v330
    %v341 = vpop.f32.mrf.mxu0
    %v342 = vadd.f32 %v327, %v341
    %v343 = vpop.f32.mrf.mxu0
    %344 = vdwg.mxu0
    %vm345 = vcmask 9216
    %346 = vst.msk [vmem:[#allocation5] sm:$0x3] %vm345, %v342
    // Predicated region
    $region14: #{tpu_custom_call.1} parent=1 // pred_check
      _
    $region15: #{tpu_custom_call.1} parent=1 // pred_check_branch
      %348 = sbr.rel (0) target = $region17
    $region16: #{tpu_custom_call.1} parent=1 // pred_region
      %350 = vsyncadd [#allocation4], 0
      %s352 = sshll.u32 [#allocation5], 4
      %s353 = int_to_ptr.vmem [resolvable:$true] %s352
      %s354 = sshll.u32 %s2, 4
      %s355 = int_to_ptr.hbm [resolvable:$true] %s354
      %357 = dma.vmem_to_hbm [thread:$0]  %s353, 32, %s355, [#allocation4]
    $region17: #{tpu_custom_call.1} parent=1 // pred_fallthru
      _
    // Predicated region
    $region18: #{tpu_custom_call.1} parent=1 // pred_check
      _
    $region19: #{tpu_custom_call.1} parent=1 // pred_check_branch
      %359 = sbr.rel (0) target = $region21
    $region20: #{tpu_custom_call.1} parent=1 // pred_region
      %361 = dma.done [#allocation4], 32
    $region21: #{tpu_custom_call.1} parent=1 // pred_fallthru
      _
    %362 = vsyncpa [#allocation3], 1
    %363 = vsyncpa [#allocation4], 1

</llo_original>
